<compile_context>
chip_gen: v7x
topology: tpu7x:2x2x1
jax: 0.10.0
libtpu: 0.0.40
codegen_flags: <defaults>
</compile_context>

<pallas_src>
import jax
import jax.numpy as jnp
from jax.experimental import pallas as pl
from jax.experimental.pallas import tpu as pltpu


def _round_up(x: int, m: int) -> int:
    return ((x + m - 1) // m) * m


def _obs_mlp_kernel(hs_ref, st_ref, w1_ref, b1_ref, w2_ref, b2_ref,
                    w3_ref, b3_ref, o_ref, x_ref):
    """One batch tile: concat fused in VMEM + 3 matmuls; bias/ReLU in f32."""
    rnn = hs_ref.shape[-1]

    # Fused torch.cat: write both bf16 halves into one (tb, rnn+state) tile.
    x_ref[:, :rnn] = hs_ref[...]
    x_ref[:, rnn:] = st_ref[...]

    # fc1: single K=(rnn+state) matmul with f32 MXU accumulation.
    h1 = jnp.dot(x_ref[...], w1_ref[...],
                 preferred_element_type=jnp.float32) + b1_ref[...]
    h1 = jnp.maximum(h1, 0.0)

    # fc2
    h2 = jnp.dot(h1.astype(jnp.bfloat16), w2_ref[...],
                 preferred_element_type=jnp.float32) + b2_ref[...]
    h2 = jnp.maximum(h2, 0.0)

    # fc3 (output lanes padded to a multiple of 128 -> unmasked stores)
    out = jnp.dot(h2.astype(jnp.bfloat16), w3_ref[...],
                  preferred_element_type=jnp.float32) + b3_ref[...]
    o_ref[...] = out.astype(o_ref.dtype)


def prepare_params(params):
    """One-time lane padding (->128 multiples) + bf16 cast of the weights.

    Hoisted out of the per-call path so the pad/convert HBM pass over the
    weights is not repeated every forward call.
    """
    w1, b1 = params["w1"], params["b1"]
    w2, b2 = params["w2"], params["b2"]
    w3, b3 = params["w3"], params["b3"]
    hidden = w1.shape[1]
    obs_size = w3.shape[1]
    h_pad = _round_up(hidden, 128)
    o_pad = _round_up(obs_size, 128)

    def pad2(a, rows, cols):
        a = jnp.atleast_2d(a)
        return jnp.pad(a, ((0, rows - a.shape[0]), (0, cols - a.shape[1])))

    return {
        "w1": pad2(w1, w1.shape[0], h_pad).astype(jnp.bfloat16),  # (rnn+state, h_pad)
        "b1": pad2(b1, 1, h_pad).astype(jnp.float32),
        "w2": pad2(w2, h_pad, h_pad).astype(jnp.bfloat16),
        "b2": pad2(b2, 1, h_pad).astype(jnp.float32),
        "w3": pad2(w3, h_pad, o_pad).astype(jnp.bfloat16),
        "b3": pad2(b3, 1, o_pad).astype(jnp.float32),
    }


def observation_model_forward(hidden_state, state, prepared, *, obs_size,
                              batch_tile=1024, out_dtype=None,
                              vmem_stream_budget=20 << 20):
    """x = cat([hidden_state, state], -1); relu(fc1(x)); relu(fc2); fc3."""
    rnn = hidden_state.shape[-1]
    state_w = state.shape[-1]
    k_in = rnn + state_w
    lead_shape = hidden_state.shape[:-1]
    if out_dtype is None:
        out_dtype = hidden_state.dtype

    w1p, b1p = prepared["w1"], prepared["b1"]
    w2p, b2p = prepared["w2"], prepared["b2"]
    w3p, b3p = prepared["w3"], prepared["b3"]
    assert w1p.shape[0] == k_in, "prepared w1 rows must equal rnn_hidden + state"
    h_pad = w1p.shape[1]
    o_pad = w3p.shape[1]
    out_bytes = jnp.dtype(out_dtype).itemsize

    # Stream activations in bf16 (the matmul operands are bf16 anyway): halves
    # the dominant HBM traffic.
    hs2d = hidden_state.reshape((-1, rnn)).astype(jnp.bfloat16)
    st2d = state.reshape((-1, state_w)).astype(jnp.bfloat16)
    b_total = hs2d.shape[0]

    # ---- batch-tile selection under an explicit VMEM byte budget (v7x-safe) --
    # per row: double-buffered bf16 input tiles + double-buffered output tile
    #          + concat scratch + f32 intermediates (h1/h2 + slack).
    per_row = (2 * k_in * 2) + (2 * o_pad * out_bytes) + (k_in * 2) + (3 * h_pad * 4)
    tb_cap = max(16, (vmem_stream_budget // per_row) // 16 * 16)
    tb = min(batch_tile, tb_cap)
    if b_total <= tb:
        if b_total >= 32:
            # keep >=2 grid steps so both v7x TensorCores get a share
            tb = _round_up(pl.cdiv(b_total, 2), 16)
        else:
            tb = _round_up(max(b_total, 1), 16)   # 16-sublane rounding for bf16
    b_padded = _round_up(b_total, tb)
    if b_padded != b_total:
        hs2d = jnp.pad(hs2d, ((0, b_padded - b_total), (0, 0)))
        st2d = jnp.pad(st2d, ((0, b_padded - b_total), (0, 0)))
    grid = (b_padded // tb,)

    weight_bytes = sum(int(a.size) * a.dtype.itemsize
                       for a in (w1p, b1p, w2p, b2p, w3p, b3p))
    req = tb * per_row + weight_bytes
    vmem_limit = int(min(max(2 * req + (8 << 20), 32 << 20), 48 << 20))

    # Weights/biases never change across grid steps -> resident, single-buffered.
    def resident(a):
        return pl.BlockSpec(a.shape, lambda i: (0, 0), pipeline_mode=pl.Buffered(1))

    # TODO(synk): for very wide observations (o_pad >~ 2048) add a second grid
    # axis tiling w3/b3/output over N so the output double-buffer stays bounded.
    out_pad = pl.pallas_call(
        _obs_mlp_kernel,
        out_shape=jax.ShapeDtypeStruct((b_padded, o_pad), out_dtype),
        grid=grid,
        in_specs=[
            pl.BlockSpec((tb, rnn), lambda i: (i, 0)),      # hidden_state tile
            pl.BlockSpec((tb, state_w), lambda i: (i, 0)),  # state tile
            resident(w1p), resident(b1p),
            resident(w2p), resident(b2p),
            resident(w3p), resident(b3p),
        ],
        out_specs=pl.BlockSpec((tb, o_pad), lambda i: (i, 0)),
        scratch_shapes=[pltpu.VMEM((tb, k_in), jnp.bfloat16)],  # fused-concat tile
        compiler_params=pltpu.CompilerParams(
            dimension_semantics=("parallel",),
            vmem_limit_bytes=vmem_limit,
        ),
    )(hs2d, st2d, w1p, b1p, w2p, b2p, w3p, b3p)

    # Skip the extra HBM read+write of the de-pad slice when it is a no-op.
    if b_padded != b_total or o_pad != obs_size:
        out = out_pad[:b_total, :obs_size]
    else:
        out = out_pad
    return out.reshape(lead_shape + (obs_size,))


def init_params(key, rnn_hidden_size, state_size, observation_size, hidden_size=200,
                dtype=jnp.float32):
    """nn.Linear-style init; weights stored transposed as (in_features, out_features)."""
    input_size = rnn_hidden_size + state_size

    def linear(k, fan_in, fan_out):
        kw, kb = jax.random.split(k)
        bound = 1.0 / jnp.sqrt(jnp.asarray(fan_in, dtype))
        w = jax.random.uniform(kw, (fan_in, fan_out), dtype, -bound, bound)
        b = jax.random.uniform(kb, (1, fan_out), dtype, -bound, bound)
        return w, b

    k1, k2, k3 = jax.random.split(key, 3)
    w1, b1 = linear(k1, input_size, hidden_size)
    w2, b2 = linear(k2, hidden_size, hidden_size)
    w3, b3 = linear(k3, hidden_size, observation_size)
    return {"w1": w1, "b1": b1, "w2": w2, "b2": b2, "w3": w3, "b3": b3}


if __name__ == "__main__":
    # Small shapes consistent with the module's forward.
    rnn_hidden_size = 32
    state_size = 16
    observation_size = 24
    hidden_size = 64
    batch = 8

    key = jax.random.PRNGKey(0)
    k_h, k_s, k_p = jax.random.split(key, 3)
    hidden_state = jax.random.normal(k_h, (batch, rnn_hidden_size), jnp.float32)
    state = jax.random.normal(k_s, (batch, state_size), jnp.float32)
    params = init_params(k_p, rnn_hidden_size, state_size, observation_size, hidden_size)

    prepared = prepare_params(params)   # pad + bf16-cast ONCE, reused every call
    fwd = jax.jit(lambda h, s, p: observation_model_forward(
        h, s, p, obs_size=observation_size))
    out = fwd(hidden_state, state, prepared)
    jax.block_until_ready(out)

    # Pure-JAX f32 reference (kernel uses bf16 matmul operands -> loose tolerance).
    x = jnp.concatenate([hidden_state, state], axis=-1)
    ref = jnp.maximum(x @ params["w1"] + params["b1"], 0.0)
    ref = jnp.maximum(ref @ params["w2"] + params["b2"], 0.0)
    ref = ref @ params["w3"] + params["b3"]
    assert out.shape == (batch, observation_size)
    err = float(jnp.max(jnp.abs(out - ref)))
    assert jnp.allclose(out, ref, atol=3e-2, rtol=3e-2), err

    print("KERNEL_OK")
</pallas_src>

<mosaic_0001>
module attributes {stable_mosaic.version = 11 : i64} {
  func.func @_obs_mlp_kernel(%arg0: i32, %arg1: memref<16x32xbf16, #tpu.memory_space<vmem>>, %arg2: memref<16x16xbf16, #tpu.memory_space<vmem>>, %arg3: memref<48x128xbf16, #tpu.memory_space<vmem>>, %arg4: memref<1x128xf32, #tpu.memory_space<vmem>>, %arg5: memref<128x128xbf16, #tpu.memory_space<vmem>>, %arg6: memref<1x128xf32, #tpu.memory_space<vmem>>, %arg7: memref<128x128xbf16, #tpu.memory_space<vmem>>, %arg8: memref<1x128xf32, #tpu.memory_space<vmem>>, %arg9: memref<16x128xf32, #tpu.memory_space<vmem>>, %arg10: memref<16x48xbf16, #tpu.memory_space<vmem>>) attributes {dimension_semantics = [#tpu.dimension_semantics<parallel>], iteration_bounds = array<i64: 1>, scalar_prefetch = 0 : i64, scratch_operands = 1 : i64, tpu.core_type = #tpu.core_type<tc>, window_params = [{transform_indices = @transform_0, window_bounds = array<i64: 16, 32>}, {transform_indices = @transform_1, window_bounds = array<i64: 16, 16>}, {pipeline_mode = #tpu.pipeline_mode<synchronous>, transform_indices = @transform_2, window_bounds = array<i64: 48, 128>}, {pipeline_mode = #tpu.pipeline_mode<synchronous>, transform_indices = @transform_3, window_bounds = array<i64: 1, 128>}, {pipeline_mode = #tpu.pipeline_mode<synchronous>, transform_indices = @transform_4, window_bounds = array<i64: 128, 128>}, {pipeline_mode = #tpu.pipeline_mode<synchronous>, transform_indices = @transform_5, window_bounds = array<i64: 1, 128>}, {pipeline_mode = #tpu.pipeline_mode<synchronous>, transform_indices = @transform_6, window_bounds = array<i64: 128, 128>}, {pipeline_mode = #tpu.pipeline_mode<synchronous>, transform_indices = @transform_7, window_bounds = array<i64: 1, 128>}, {transform_indices = @transform_8, window_bounds = array<i64: 16, 128>}]} {
    %c0 = arith.constant 0 : index
    %c0_0 = arith.constant 0 : index
    %0 = vector.load %arg1[%c0, %c0_0] : memref<16x32xbf16, #tpu.memory_space<vmem>>, vector<16x32xbf16>
    %c0_1 = arith.constant 0 : index
    %c0_2 = arith.constant 0 : index
    %1 = vector.load %arg10[%c0_1, %c0_2] : memref<16x48xbf16, #tpu.memory_space<vmem>>, vector<16x32xbf16>
    tpu.vector_store %arg10[%c0_1, %c0_2], %0 {strides = array<i32>} : memref<16x48xbf16, #tpu.memory_space<vmem>>, vector<16x32xbf16>,
    %c0_3 = arith.constant 0 : index
    %c0_4 = arith.constant 0 : index
    %2 = vector.load %arg2[%c0_3, %c0_4] : memref<16x16xbf16, #tpu.memory_space<vmem>>, vector<16x16xbf16>
    %c0_5 = arith.constant 0 : index
    %c32 = arith.constant 32 : index
    %3 = vector.load %arg10[%c0_5, %c32] : memref<16x48xbf16, #tpu.memory_space<vmem>>, vector<16x16xbf16>
    tpu.vector_store %arg10[%c0_5, %c32], %2 {strides = array<i32>} : memref<16x48xbf16, #tpu.memory_space<vmem>>, vector<16x16xbf16>,
    %c0_6 = arith.constant 0 : index
    %c0_7 = arith.constant 0 : index
    %4 = vector.load %arg10[%c0_6, %c0_7] : memref<16x48xbf16, #tpu.memory_space<vmem>>, vector<16x48xbf16>
    %c0_8 = arith.constant 0 : index
    %c0_9 = arith.constant 0 : index
    %5 = vector.load %arg3[%c0_8, %c0_9] : memref<48x128xbf16, #tpu.memory_space<vmem>>, vector<48x128xbf16>
    %cst = arith.constant dense<0.000000e+00> : vector<16x128xf32>
    %6 = tpu.matmul %4, %5, %cst {dimension_numbers = #tpu.dot_dimension_numbers<[1], [0], [0], [1], [0, 0, 1, 1], [], []>} : vector<16x48xbf16>, vector<48x128xbf16>, vector<16x128xf32> -> vector<16x128xf32>
    %c0_10 = arith.constant 0 : index
    %c0_11 = arith.constant 0 : index
    %7 = vector.load %arg4[%c0_10, %c0_11] : memref<1x128xf32, #tpu.memory_space<vmem>>, vector<1x128xf32>
    %8 = vector.broadcast %7 : vector<1x128xf32> to vector<16x128xf32>
    %9 = arith.addf %6, %8 : vector<16x128xf32>
    %cst_12 = arith.constant 0.000000e+00 : f32
    %10 = vector.broadcast %cst_12 : f32 to vector<16x128xf32>
    %11 = arith.maximumf %9, %10 : vector<16x128xf32>
    %12 = arith.truncf %11 : vector<16x128xf32> to vector<16x128xbf16>
    %c0_13 = arith.constant 0 : index
    %c0_14 = arith.constant 0 : index
    %13 = vector.load %arg5[%c0_13, %c0_14] : memref<128x128xbf16, #tpu.memory_space<vmem>>, vector<128x128xbf16>
    %cst_15 = arith.constant dense<0.000000e+00> : vector<16x128xf32>
    %14 = tpu.matmul %12, %13, %cst_15 {dimension_numbers = #tpu.dot_dimension_numbers<[1], [0], [0], [1], [0, 0, 1, 1], [], []>} : vector<16x128xbf16>, vector<128x128xbf16>, vector<16x128xf32> -> vector<16x128xf32>
    %c0_16 = arith.constant 0 : index
    %c0_17 = arith.constant 0 : index
    %15 = vector.load %arg6[%c0_16, %c0_17] : memref<1x128xf32, #tpu.memory_space<vmem>>, vector<1x128xf32>
    %16 = vector.broadcast %15 : vector<1x128xf32> to vector<16x128xf32>
    %17 = arith.addf %14, %16 : vector<16x128xf32>
    %cst_18 = arith.constant 0.000000e+00 : f32
    %18 = vector.broadcast %cst_18 : f32 to vector<16x128xf32>
    %19 = arith.maximumf %17, %18 : vector<16x128xf32>
    %20 = arith.truncf %19 : vector<16x128xf32> to vector<16x128xbf16>
    %c0_19 = arith.constant 0 : index
    %c0_20 = arith.constant 0 : index
    %21 = vector.load %arg7[%c0_19, %c0_20] : memref<128x128xbf16, #tpu.memory_space<vmem>>, vector<128x128xbf16>
    %cst_21 = arith.constant dense<0.000000e+00> : vector<16x128xf32>
    %22 = tpu.matmul %20, %21, %cst_21 {dimension_numbers = #tpu.dot_dimension_numbers<[1], [0], [0], [1], [0, 0, 1, 1], [], []>} : vector<16x128xbf16>, vector<128x128xbf16>, vector<16x128xf32> -> vector<16x128xf32>
    %c0_22 = arith.constant 0 : index
    %c0_23 = arith.constant 0 : index
    %23 = vector.load %arg8[%c0_22, %c0_23] : memref<1x128xf32, #tpu.memory_space<vmem>>, vector<1x128xf32>
    %24 = vector.broadcast %23 : vector<1x128xf32> to vector<16x128xf32>
    %25 = arith.addf %22, %24 : vector<16x128xf32>
    %c0_24 = arith.constant 0 : index
    %c0_25 = arith.constant 0 : index
    %26 = vector.load %arg9[%c0_24, %c0_25] : memref<16x128xf32, #tpu.memory_space<vmem>>, vector<16x128xf32>
    tpu.vector_store %arg9[%c0_24, %c0_25], %25 {strides = array<i32>} : memref<16x128xf32, #tpu.memory_space<vmem>>, vector<16x128xf32>,
    return
  }
  func.func @transform_0(%arg0: i32) -> (i32, i32) {
    %c0_i32 = arith.constant 0 : i32
    %c0_i32_0 = arith.constant 0 : i32
    return %arg0, %c0_i32 : i32, i32
  }
  func.func @transform_1(%arg0: i32) -> (i32, i32) {
    %c0_i32 = arith.constant 0 : i32
    %c0_i32_0 = arith.constant 0 : i32
    return %arg0, %c0_i32 : i32, i32
  }
  func.func @transform_2(%arg0: i32) -> (i32, i32) {
    %c0_i32 = arith.constant 0 : i32
    %c0_i32_0 = arith.constant 0 : i32
    %c0_i32_1 = arith.constant 0 : i32
    return %c0_i32, %c0_i32_0 : i32, i32
  }
  func.func @transform_3(%arg0: i32) -> (i32, i32) {
    %c0_i32 = arith.constant 0 : i32
    %c0_i32_0 = arith.constant 0 : i32
    %c0_i32_1 = arith.constant 0 : i32
    return %c0_i32, %c0_i32_0 : i32, i32
  }
  func.func @transform_4(%arg0: i32) -> (i32, i32) {
    %c0_i32 = arith.constant 0 : i32
    %c0_i32_0 = arith.constant 0 : i32
    %c0_i32_1 = arith.constant 0 : i32
    return %c0_i32, %c0_i32_0 : i32, i32
  }
  func.func @transform_5(%arg0: i32) -> (i32, i32) {
    %c0_i32 = arith.constant 0 : i32
    %c0_i32_0 = arith.constant 0 : i32
    %c0_i32_1 = arith.constant 0 : i32
    return %c0_i32, %c0_i32_0 : i32, i32
  }
  func.func @transform_6(%arg0: i32) -> (i32, i32) {
    %c0_i32 = arith.constant 0 : i32
    %c0_i32_0 = arith.constant 0 : i32
    %c0_i32_1 = arith.constant 0 : i32
    return %c0_i32, %c0_i32_0 : i32, i32
  }
  func.func @transform_7(%arg0: i32) -> (i32, i32) {
    %c0_i32 = arith.constant 0 : i32
    %c0_i32_0 = arith.constant 0 : i32
    %c0_i32_1 = arith.constant 0 : i32
    return %c0_i32, %c0_i32_0 : i32, i32
  }
  func.func @transform_8(%arg0: i32) -> (i32, i32) {
    %c0_i32 = arith.constant 0 : i32
    %c0_i32_0 = arith.constant 0 : i32
    return %arg0, %c0_i32 : i32, i32
  }
}

</mosaic_0001>

<llo_original>
// kernel: _lambda_.1
$region0: #{_lambda_.1}
  #allocation0 [shape = 'u32[]', space=smem, size = 0x4, offset = 0x4, fixed_abs, tag = 'smem constant byte address 0x4 - core index']
  #allocation1 [shape = 'u32[144,128]{1,0:T(1,128)}', space=vmem, size = 0x12000, scoped, tag = 'internal scratch']
  #allocation2 [shape = 'bf16[16,48]{1,0:T(16,128)(2,1)}', space=vmem, size = 0x1000, scoped, tag = 'scratch operand']
  %s0 = inlined_call_operand.vmem [shape: bf16[16,32], index: 0, kind: input, shape index: {}]
  %s1 = inlined_call_operand.vmem [shape: bf16[16,16], index: 1, kind: input, shape index: {}]
  %s2 = inlined_call_operand.hbm [shape: bf16[48,128], index: 2, kind: input, shape index: {}]
  %s3 = inlined_call_operand.vmem [shape: f32[1,128], index: 3, kind: input, shape index: {}]
  %s4 = inlined_call_operand.vmem [shape: bf16[128,128], index: 4, kind: input, shape index: {}]
  %s5 = inlined_call_operand.vmem [shape: f32[1,128], index: 5, kind: input, shape index: {}]
  %s6 = inlined_call_operand.hbm [shape: bf16[128,128], index: 6, kind: input, shape index: {}]
  %s7 = inlined_call_operand.vmem [shape: f32[1,128], index: 7, kind: input, shape index: {}]
  %s8 = inlined_call_operand.vmem [shape: f32[16,128], index: 8, kind: output, shape index: {}]
  %s9 = sld [smem:[#allocation0]]
  $region50: #{_lambda_.1} parent=0
    _
  %s11 = ssub.s32 1, %s9
  %s12 = scalar_select 0, %s11, %s9
  $region1: #{_lambda_.1} parent=0
    #allocation3 [shape = 'u8[12288]{0}', space=vmem, size = 0x3000, scoped, tag = 'input window, operand 2, single buffered']
    #allocation4 [shape = 's32[1]{0}', space=sflag, size = 0x4, scoped, tag = 'scoped memory for _lambda_.1']
    #allocation5 [shape = 'u8[32768]{0}', space=vmem, size = 0x8000, scoped, tag = 'input window, operand 6, single buffered']
    #allocation6 [shape = 's32[1]{0}', space=sflag, size = 0x4, scoped, tag = 'scoped memory for _lambda_.1']
    %13 = vsyncpa [#allocation4], 0
    %14 = vsyncpa [#allocation6], 0
    // Predicated region
    $region2: #{_lambda_.1} parent=1 // pred_check
      _
    $region3: #{_lambda_.1} parent=1 // pred_check_branch
      %16 = sbr.rel (0) target = $region5
    $region4: #{_lambda_.1} parent=1 // pred_region
      _
    $region5: #{_lambda_.1} parent=1 // pred_fallthru
      _
    // Predicated region
    $region6: #{_lambda_.1} parent=1 // pred_check
      _
    $region7: #{_lambda_.1} parent=1 // pred_check_branch
      %18 = sbr.rel (0) target = $region9
    $region8: #{_lambda_.1} parent=1 // pred_region
      _
    $region9: #{_lambda_.1} parent=1 // pred_fallthru
      _
    // Predicated region
    $region10: #{_lambda_.1} parent=1 // pred_check
      _
    $region11: #{_lambda_.1} parent=1 // pred_check_branch
      %20 = sbr.rel (0) target = $region13
    $region12: #{_lambda_.1} parent=1 // pred_region
      %s22 = ssub.s32 384, 384
      %23 = vsyncadd [#allocation4], %s22
      %s24 = sshll.u32 [#allocation3], 4
      %s25 = int_to_ptr.vmem [resolvable:$true] %s24
      %30 = dma.hbm_to_vmem [thread:$0]  %s2, 384, %s25, [#allocation4], 64, 64, 4
    $region13: #{_lambda_.1} parent=1 // pred_fallthru
      _
    // Predicated region
    $region14: #{_lambda_.1} parent=1 // pred_check
      _
    $region15: #{_lambda_.1} parent=1 // pred_check_branch
      %32 = sbr.rel (0) target = $region17
    $region16: #{_lambda_.1} parent=1 // pred_region
      _
    $region17: #{_lambda_.1} parent=1 // pred_fallthru
      _
    // Predicated region
    $region18: #{_lambda_.1} parent=1 // pred_check
      _
    $region19: #{_lambda_.1} parent=1 // pred_check_branch
      %34 = sbr.rel (0) target = $region21
    $region20: #{_lambda_.1} parent=1 // pred_region
      _
    $region21: #{_lambda_.1} parent=1 // pred_fallthru
      _
    // Predicated region
    $region22: #{_lambda_.1} parent=1 // pred_check
      _
    $region23: #{_lambda_.1} parent=1 // pred_check_branch
      %36 = sbr.rel (0) target = $region25
    $region24: #{_lambda_.1} parent=1 // pred_region
      _
    $region25: #{_lambda_.1} parent=1 // pred_fallthru
      _
    // Predicated region
    $region26: #{_lambda_.1} parent=1 // pred_check
      _
    $region27: #{_lambda_.1} parent=1 // pred_check_branch
      %38 = sbr.rel (0) target = $region29
    $region28: #{_lambda_.1} parent=1 // pred_region
      %s40 = ssub.s32 1024, 1024
      %41 = vsyncadd [#allocation6], %s40
      %s42 = sshll.u32 [#allocation5], 4
      %s43 = int_to_ptr.vmem [resolvable:$true] %s42
      %48 = dma.hbm_to_vmem [thread:$0]  %s6, 1024, %s43, [#allocation6], 64, 64, 4
    $region29: #{_lambda_.1} parent=1 // pred_fallthru
      _
    // Predicated region
    $region30: #{_lambda_.1} parent=1 // pred_check
      _
    $region31: #{_lambda_.1} parent=1 // pred_check_branch
      %50 = sbr.rel (0) target = $region33
    $region32: #{_lambda_.1} parent=1 // pred_region
      _
    $region33: #{_lambda_.1} parent=1 // pred_fallthru
      _
    // Predicated region
    $region34: #{_lambda_.1} parent=1 // pred_check
      _
    $region35: #{_lambda_.1} parent=1 // pred_check_branch
      %52 = sbr.rel (0) target = $region37
    $region36: #{_lambda_.1} parent=1 // pred_region
      %53 = dma.done [#allocation4], 384
    $region37: #{_lambda_.1} parent=1 // pred_fallthru
      _
    // Predicated region
    $region38: #{_lambda_.1} parent=1 // pred_check
      _
    $region39: #{_lambda_.1} parent=1 // pred_check_branch
      %55 = sbr.rel (0) target = $region41
    $region40: #{_lambda_.1} parent=1 // pred_region
      %56 = dma.done [#allocation6], 1024
    $region41: #{_lambda_.1} parent=1 // pred_fallthru
      _
    %v58 = vld [vmem:[%s0] sm:$0xf]
    %v59 = vld [vmem:[%s0 + $0x4] sm:$0xf]
    %v62 = vunpack.c.l.b16 %v58
    %v63 = vunpack.c.l.b16 %v59
    %v64 = vpack.c.b16 %v63, %v62
    %vm66 = vcmask 261120
    %67 = vst.msk [vmem:[#allocation2] sm:$0xff] %vm66, %v64
    %v68 = vld [vmem:[%s1] sm:$0xf]
    %v69 = vld [vmem:[%s1 + $0x4] sm:$0xf]
    %v72 = vunpack.c.l.b16 %v68
    %v73 = vunpack.c.l.b16 %v69
    %v74 = vpack.c.b16 %v73, %v72
    %75 = vrot.lane.b32.xlu0 %v74, 32
    %v76 = vpop.permute.xlu0 %75
    %vm78 = vcmask 392448
    %79 = vst.msk [vmem:[#allocation2] sm:$0xff] %vm78, %v76
    %v80 = vld [vmem:[#allocation2] sm:$0xff]
    %v81 = vld [vmem:[#allocation3] sm:$0xf]
    %v82 = vld [vmem:[#allocation3 + $0x4] sm:$0xf]
    %v83 = vld [vmem:[#allocation3 + $0x8] sm:$0xf]
    %v84 = vld [vmem:[#allocation3 + $0xc] sm:$0xf]
    %v85 = vld [vmem:[#allocation3 + $0x10] sm:$0xf]
    %v86 = vld [vmem:[#allocation3 + $0x14] sm:$0xf]
    %v87 = vld [vmem:[%s3] sm:$0x1]
    %v89 = vlaneseq
    %v90 = vshrl.u32 %v89, 7
    %v91 = vsub.s32 0, %v90
    %v92 = vrot.slane %v87, %v91
    %v100 = vunpack.c.l.b16 %v81
    %v101 = vunpack.c.l.b16 %v82
    %v102 = vunpack.c.l.b16 %v83
    %v103 = vunpack.c.l.b16 %v84
    %v104 = vunpack.c.l.b16 %v85
    %v105 = vunpack.c.l.b16 %v86
    %v106 = vpack.c.b16 %v101, %v100
    %v107 = vpack.c.b16 %v103, %v102
    %v108 = vpack.c.b16 %v105, %v104
    %vm112 = vcmask 392192
    %v114 = vsel %vm112, %v80, 0
    %116 = vmatprep.subr.bf16.mxu0 0
    %117 = vmatpush1.bf16.msra.mxu0 %v106
    %118 = vmatprep.subr.bf16.mxu0 0
    %119 = vmatpush1.bf16.msra.mxu0 %v107
    %120 = vmatprep.subr.bf16.mxu0 0
    %121 = vmatpush1.bf16.msra.mxu0 %v108
    %122 = vmatprep.subr.bf16.mxu0 0
    %123 = vmatpush1.bf16.msra.mxu0 0
    %124 = vmatprep.subr.bf16.mxu0 0
    %125 = vmatpush1.bf16.msra.mxu0 0
    %126 = vmatprep.subr.bf16.mxu0 0
    %127 = vmatpush1.bf16.msra.mxu0 0
    %128 = vmatprep.subr.bf16.mxu0 0
    %129 = vmatpush1.bf16.msra.mxu0 0
    %130 = vmatprep.subr.bf16.mxu0 0
    %131 = vmatpush1.bf16.msra.mxu0 0
    %132 = vmatprep.subr.bf16.mxu0 0
    %133 = vmatpush1.bf16.msra.mxu0 0
    %134 = vmatprep.subr.bf16.mxu0 0
    %135 = vmatpush1.bf16.msra.mxu0 0
    %136 = vmatprep.subr.bf16.mxu0 0
    %137 = vmatpush1.bf16.msra.mxu0 0
    %138 = vmatprep.subr.bf16.mxu0 0
    %139 = vmatpush1.bf16.msra.mxu0 0
    %140 = vmatprep.subr.bf16.mxu0 0
    %141 = vmatpush1.bf16.msra.mxu0 0
    %142 = vmatprep.subr.bf16.mxu0 0
    %143 = vmatpush1.bf16.msra.mxu0 0
    %144 = vmatprep.subr.bf16.mxu0 0
    %145 = vmatpush1.bf16.msra.mxu0 0
    %146 = vmatprep.subr.bf16.mxu0 0
    %147 = vmatpush1.bf16.msra.mxu0 0
    %148 = vmatprep.mubr.bf16.mxu0 0
    %149 = vmatmul.mubr.bf16.gmra.mrb[0].mxu0 %v114
    %v150 = vpop.f32.mrb[0].mxu0
    %v151 = vadd.f32 %v92, %v150
    %v152 = vpop.f32.mrb[0].mxu0
    %v153 = vpop.f32.mrb[0].mxu0
    %v154 = vadd.f32 %v92, %v153
    %v155 = vpop.f32.mrb[0].mxu0
    %156 = vdwg.mxu0
    %v157 = vmax.f32 %v151, 0.0
    %v158 = vmax.f32 %v154, 0.0
    %v159 = vpack.c.bf16 %v158, %v157
    %v160 = vld [vmem:[%s4] sm:$0xf]
    %v161 = vld [vmem:[%s4 + $0x4] sm:$0xf]
    %v162 = vld [vmem:[%s4 + $0x8] sm:$0xf]
    %v163 = vld [vmem:[%s4 + $0xc] sm:$0xf]
    %v164 = vld [vmem:[%s4 + $0x10] sm:$0xf]
    %v165 = vld [vmem:[%s4 + $0x14] sm:$0xf]
    %v166 = vld [vmem:[%s4 + $0x18] sm:$0xf]
    %v167 = vld [vmem:[%s4 + $0x1c] sm:$0xf]
    %v168 = vld [vmem:[%s4 + $0x20] sm:$0xf]
    %v169 = vld [vmem:[%s4 + $0x24] sm:$0xf]
    %v170 = vld [vmem:[%s4 + $0x28] sm:$0xf]
    %v171 = vld [vmem:[%s4 + $0x2c] sm:$0xf]
    %v172 = vld [vmem:[%s4 + $0x30] sm:$0xf]
    %v173 = vld [vmem:[%s4 + $0x34] sm:$0xf]
    %v174 = vld [vmem:[%s4 + $0x38] sm:$0xf]
    %v175 = vld [vmem:[%s4 + $0x3c] sm:$0xf]
    %v176 = vld [vmem:[%s5] sm:$0x1]
    %v178 = vlaneseq
    %v179 = vshrl.u32 %v178, 7
    %v180 = vsub.s32 0, %v179
    %v181 = vrot.slane %v176, %v180
    %v199 = vunpack.c.l.b16 %v160
    %v200 = vunpack.c.l.b16 %v161
    %v201 = vunpack.c.l.b16 %v162
    %v202 = vunpack.c.l.b16 %v163
    %v203 = vunpack.c.l.b16 %v164
    %v204 = vunpack.c.l.b16 %v165
    %v205 = vunpack.c.l.b16 %v166
    %v206 = vunpack.c.l.b16 %v167
    %v207 = vunpack.c.l.b16 %v168
    %v208 = vunpack.c.l.b16 %v169
    %v209 = vunpack.c.l.b16 %v170
    %v210 = vunpack.c.l.b16 %v171
    %v211 = vunpack.c.l.b16 %v172
    %v212 = vunpack.c.l.b16 %v173
    %v213 = vunpack.c.l.b16 %v174
    %v214 = vunpack.c.l.b16 %v175
    %v215 = vpack.c.b16 %v200, %v199
    %v216 = vpack.c.b16 %v202, %v201
    %v217 = vpack.c.b16 %v204, %v203
    %v218 = vpack.c.b16 %v206, %v205
    %v219 = vpack.c.b16 %v208, %v207
    %v220 = vpack.c.b16 %v210, %v209
    %v221 = vpack.c.b16 %v212, %v211
    %v222 = vpack.c.b16 %v214, %v213
    %231 = vmatprep.subr.bf16.mxu0 0
    %232 = vmatpush1.bf16.msra.mxu0 %v215
    %233 = vmatprep.subr.bf16.mxu0 0
    %234 = vmatpush1.bf16.msra.mxu0 %v216
    %235 = vmatprep.subr.bf16.mxu0 0
    %236 = vmatpush1.bf16.msra.mxu0 %v217
    %237 = vmatprep.subr.bf16.mxu0 0
    %238 = vmatpush1.bf16.msra.mxu0 %v218
    %239 = vmatprep.subr.bf16.mxu0 0
    %240 = vmatpush1.bf16.msra.mxu0 %v219
    %241 = vmatprep.subr.bf16.mxu0 0
    %242 = vmatpush1.bf16.msra.mxu0 %v220
    %243 = vmatprep.subr.bf16.mxu0 0
    %244 = vmatpush1.bf16.msra.mxu0 %v221
    %245 = vmatprep.subr.bf16.mxu0 0
    %246 = vmatpush1.bf16.msra.mxu0 %v222
    %247 = vmatprep.subr.bf16.mxu0 0
    %248 = vmatpush1.bf16.msra.mxu0 0
    %249 = vmatprep.subr.bf16.mxu0 0
    %250 = vmatpush1.bf16.msra.mxu0 0
    %251 = vmatprep.subr.bf16.mxu0 0
    %252 = vmatpush1.bf16.msra.mxu0 0
    %253 = vmatprep.subr.bf16.mxu0 0
    %254 = vmatpush1.bf16.msra.mxu0 0
    %255 = vmatprep.subr.bf16.mxu0 0
    %256 = vmatpush1.bf16.msra.mxu0 0
    %257 = vmatprep.subr.bf16.mxu0 0
    %258 = vmatpush1.bf16.msra.mxu0 0
    %259 = vmatprep.subr.bf16.mxu0 0
    %260 = vmatpush1.bf16.msra.mxu0 0
    %261 = vmatprep.subr.bf16.mxu0 0
    %262 = vmatpush1.bf16.msra.mxu0 0
    %263 = vmatprep.mubr.bf16.mxu0 0
    %264 = vmatmul.mubr.bf16.gmra.mrb[0].mxu0 %v159
    %v265 = vpop.f32.mrb[0].mxu0
    %v266 = vadd.f32 %v181, %v265
    %v267 = vpop.f32.mrb[0].mxu0
    %v268 = vpop.f32.mrb[0].mxu0
    %v269 = vadd.f32 %v181, %v268
    %v270 = vpop.f32.mrb[0].mxu0
    %271 = vdwg.mxu0
    %v272 = vmax.f32 %v266, 0.0
    %v273 = vmax.f32 %v269, 0.0
    %v274 = vpack.c.bf16 %v273, %v272
    %v275 = vld [vmem:[#allocation5] sm:$0xf]
    %v276 = vld [vmem:[#allocation5 + $0x4] sm:$0xf]
    %v277 = vld [vmem:[#allocation5 + $0x8] sm:$0xf]
    %v278 = vld [vmem:[#allocation5 + $0xc] sm:$0xf]
    %v279 = vld [vmem:[#allocation5 + $0x10] sm:$0xf]
    %v280 = vld [vmem:[#allocation5 + $0x14] sm:$0xf]
    %v281 = vld [vmem:[#allocation5 + $0x18] sm:$0xf]
    %v282 = vld [vmem:[#allocation5 + $0x1c] sm:$0xf]
    %v283 = vld [vmem:[#allocation5 + $0x20] sm:$0xf]
    %v284 = vld [vmem:[#allocation5 + $0x24] sm:$0xf]
    %v285 = vld [vmem:[#allocation5 + $0x28] sm:$0xf]
    %v286 = vld [vmem:[#allocation5 + $0x2c] sm:$0xf]
    %v287 = vld [vmem:[#allocation5 + $0x30] sm:$0xf]
    %v288 = vld [vmem:[#allocation5 + $0x34] sm:$0xf]
    %v289 = vld [vmem:[#allocation5 + $0x38] sm:$0xf]
    %v290 = vld [vmem:[#allocation5 + $0x3c] sm:$0xf]
    %v291 = vld [vmem:[%s7] sm:$0x1]
    %v293 = vlaneseq
    %v294 = vshrl.u32 %v293, 7
    %v295 = vsub.s32 0, %v294
    %v296 = vrot.slane %v291, %v295
    %v314 = vunpack.c.l.b16 %v275
    %v315 = vunpack.c.l.b16 %v276
    %v316 = vunpack.c.l.b16 %v277
    %v317 = vunpack.c.l.b16 %v278
    %v318 = vunpack.c.l.b16 %v279
    %v319 = vunpack.c.l.b16 %v280
    %v320 = vunpack.c.l.b16 %v281
    %v321 = vunpack.c.l.b16 %v282
    %v322 = vunpack.c.l.b16 %v283
    %v323 = vunpack.c.l.b16 %v284
    %v324 = vunpack.c.l.b16 %v285
    %v325 = vunpack.c.l.b16 %v286
    %v326 = vunpack.c.l.b16 %v287
    %v327 = vunpack.c.l.b16 %v288
    %v328 = vunpack.c.l.b16 %v289
    %v329 = vunpack.c.l.b16 %v290
    %v330 = vpack.c.b16 %v315, %v314
    %v331 = vpack.c.b16 %v317, %v316
    %v332 = vpack.c.b16 %v319, %v318
    %v333 = vpack.c.b16 %v321, %v320
    %v334 = vpack.c.b16 %v323, %v322
    %v335 = vpack.c.b16 %v325, %v324
    %v336 = vpack.c.b16 %v327, %v326
    %v337 = vpack.c.b16 %v329, %v328
    %346 = vmatprep.subr.bf16.mxu0 0
    %347 = vmatpush1.bf16.msra.mxu0 %v330
    %348 = vmatprep.subr.bf16.mxu0 0
    %349 = vmatpush1.bf16.msra.mxu0 %v331
    %350 = vmatprep.subr.bf16.mxu0 0
    %351 = vmatpush1.bf16.msra.mxu0 %v332
    %352 = vmatprep.subr.bf16.mxu0 0
    %353 = vmatpush1.bf16.msra.mxu0 %v333
    %354 = vmatprep.subr.bf16.mxu0 0
    %355 = vmatpush1.bf16.msra.mxu0 %v334
    %356 = vmatprep.subr.bf16.mxu0 0
    %357 = vmatpush1.bf16.msra.mxu0 %v335
    %358 = vmatprep.subr.bf16.mxu0 0
    %359 = vmatpush1.bf16.msra.mxu0 %v336
    %360 = vmatprep.subr.bf16.mxu0 0
    %361 = vmatpush1.bf16.msra.mxu0 %v337
    %362 = vmatprep.subr.bf16.mxu0 0
    %363 = vmatpush1.bf16.msra.mxu0 0
    %364 = vmatprep.subr.bf16.mxu0 0
    %365 = vmatpush1.bf16.msra.mxu0 0
    %366 = vmatprep.subr.bf16.mxu0 0
    %367 = vmatpush1.bf16.msra.mxu0 0
    %368 = vmatprep.subr.bf16.mxu0 0
    %369 = vmatpush1.bf16.msra.mxu0 0
    %370 = vmatprep.subr.bf16.mxu0 0
    %371 = vmatpush1.bf16.msra.mxu0 0
    %372 = vmatprep.subr.bf16.mxu0 0
    %373 = vmatpush1.bf16.msra.mxu0 0
    %374 = vmatprep.subr.bf16.mxu0 0
    %375 = vmatpush1.bf16.msra.mxu0 0
    %376 = vmatprep.subr.bf16.mxu0 0
    %377 = vmatpush1.bf16.msra.mxu0 0
    %378 = vmatprep.mubr.bf16.mxu0 0
    %379 = vmatmul.mubr.bf16.gmra.mrb[0].mxu0 %v274
    %v380 = vpop.f32.mrb[0].mxu0
    %v381 = vadd.f32 %v296, %v380
    %v382 = vpop.f32.mrb[0].mxu0
    %v383 = vpop.f32.mrb[0].mxu0
    %v384 = vadd.f32 %v296, %v383
    %v385 = vpop.f32.mrb[0].mxu0
    %386 = vdwg.mxu0
    %387 = vst [vmem:[%s8] sm:$0xff] %v381
    %388 = vst [vmem:[%s8 + $0x8] sm:$0xff] %v384
    // Predicated region
    $region42: #{_lambda_.1} parent=1 // pred_check
      _
    $region43: #{_lambda_.1} parent=1 // pred_check_branch
      %390 = sbr.rel (0) target = $region45
    $region44: #{_lambda_.1} parent=1 // pred_region
      _
    $region45: #{_lambda_.1} parent=1 // pred_fallthru
      _
    // Predicated region
    $region46: #{_lambda_.1} parent=1 // pred_check
      _
    $region47: #{_lambda_.1} parent=1 // pred_check_branch
      %392 = sbr.rel (0) target = $region49
    $region48: #{_lambda_.1} parent=1 // pred_region
      _
    $region49: #{_lambda_.1} parent=1 // pred_fallthru
      _
    %393 = vsyncpa [#allocation4], 1
    %394 = vsyncpa [#allocation6], 1

</llo_original>
